<compile_context>
chip_gen: v5e
topology: v5e:2x2
jax: 0.10.0
libtpu: 0.0.40
codegen_flags: <defaults>
</compile_context>

<pallas_src>
import functools

import jax
import jax.numpy as jnp
from jax.experimental import pallas as pl
from jax.experimental.pallas import tpu as pltpu


# ---------------------------------------------------------------------------
# Option container (mirrors BatchPairContrastiveLossOption defaults)
# ---------------------------------------------------------------------------
class BatchPairContrastiveLossOption:
    def __init__(self, w_p_in=1.0, w_p_pooc=0.5, w_n_in=0.0, w_n_pooc=0.5,
                 w_n_des=1.0, w_n_mix=1.0, normalize=True, tau=0.5,
                 eps=1e-08, pos_in_denom=False):
        self.w_p_in = w_p_in
        self.w_p_pooc = w_p_pooc
        self.w_n_in = w_n_in
        self.w_n_pooc = w_n_pooc
        self.w_n_des = w_n_des
        self.w_n_mix = w_n_mix
        self.normalize = normalize
        self.tau = tau
        self.eps = eps
        self.pos_in_denom = pos_in_denom  # unused by the torch forward as well


_LANE = 128
_PAD_LABEL = 1.0e6   # sentinel label for padded rows/cols: max() with it lands
                     # in no pair-type category, so padded entries contribute 0.


def _round_up(v, m):
    return (v + m - 1) // m * m


# ---------------------------------------------------------------------------
# Pallas kernel: one (tm, tn) tile of the pair matrix per grid step
# ---------------------------------------------------------------------------
def _bpc_tile_kernel(lab_col_ref, lab_row_ref, xrow_ref, xtcol_ref,
                     o_no_ref, o_de_ref, *, half_b,
                     w_p_in, w_p_pooc, w_n_in, w_n_pooc, w_n_des, w_n_mix):
    tm = xrow_ref.shape[0]
    tn = xtcol_ref.shape[1]
    r = pl.program_id(0)   # row-block index ("parallel" — megacore-shardable)
    c = pl.program_id(1)   # col-block index ("arbitrary" — reduction axis)

    # Zero the per-row-block partial-sum accumulators on the first column step.
    @pl.when(c == 0)
    def _init():
        o_no_ref[...] = jnp.zeros_like(o_no_ref)
        o_de_ref[...] = jnp.zeros_like(o_de_ref)

    # Plain (tm, K) x (K, tn) MXU matmul — RHS is pre-transposed in the wrapper,
    # so no per-tile vxpose; 1/tau is already folded into both operands.
    sim = jax.lax.dot_general(xrow_ref[...], xtcol_ref[...],
                              (((1,), (0,)), ((), ())),
                              preferred_element_type=jnp.float32)   # (tm, tn)
    e = jnp.exp(sim)                                                # EUP

    lab_c = lab_col_ref[...]                        # (tm, 1) f32
    lab_r = lab_row_ref[...]                        # (1, tn) f32
    pair_max = jnp.maximum(lab_c, lab_r)            # (tm, tn)

    r_idx = r * tm + jax.lax.broadcasted_iota(jnp.int32, (tm, 1), 0)
    c_idx = c * tn + jax.lax.broadcasted_iota(jnp.int32, (1, tn), 1)
    diff = r_idx - c_idx                            # (tm, tn)

    t0 = pair_max == 0.0
    contra = jnp.abs(diff) == half_b                # |i-j|==B  (implies i != j)
    nc_ns = (diff != 0) & jnp.logical_not(contra)   # not-self & not-contra

    inclass = contra & t0                           # positive in-class pair
    pooc = nc_ns & t0                               # positive out-of-contrastive

    num_terms = [(inclass, float(w_p_in)), (pooc, float(w_p_pooc))]
    den_terms = [(inclass, float(w_n_in)), (pooc, float(w_n_pooc))]
    if float(w_n_des) != 0.0:   # pair types {1..6} collapse to "destructive"
        den_terms.append(
            (nc_ns & (pair_max >= 1.0) & (pair_max <= 6.0), float(w_n_des)))
    if float(w_n_mix) != 0.0:
        den_terms.append((nc_ns & (pair_max == 7.0), float(w_n_mix)))

    def _weighted(terms):
        acc = None
        for mask, w in terms:
            if w == 0.0:                 # compile-time dead-weight elimination
                continue
            contrib = jnp.where(mask, e, 0.0)
            if w != 1.0:
                contrib = contrib * jnp.float32(w)
            acc = contrib if acc is None else acc + contrib
        return acc if acc is not None else jnp.zeros_like(e)

    num_vals = _weighted(num_terms)
    den_vals = _weighted(den_terms)

    # Lane-axis partial reduce only; the remaining reduce + -log finalize run in
    # the wrapper, so the row axis carries no cross-block dependency.
    o_no_ref[...] += jnp.sum(num_vals, axis=1, keepdims=True)       # (tm, 1)
    o_de_ref[...] += jnp.sum(den_vals, axis=1, keepdims=True)       # (tm, 1)


# ---------------------------------------------------------------------------
# Wrapper
# ---------------------------------------------------------------------------
def batch_pair_contrastive_loss(xi, xj, labels, opt: BatchPairContrastiveLossOption,
                                *, matmul_dtype=jnp.bfloat16, tm=None, tn=None):
    """xi, xj: (B, D) float; labels: (B,) ints in {0..7}. Returns scalar loss."""
    b, d = xi.shape
    n = 2 * b

    # ---- tile / padding selection ------------------------------------------
    n_pad = _round_up(max(n, _LANE), _LANE)
    if tm is None:
        tm = 256 if n_pad >= 256 else 128     # fill the 256-wide MXU on v6e/v7x
    n_pad = _round_up(n_pad, tm)
    if tn is None:
        for cand in (1024, 512, 256, 128):    # bound live (tm, tn) f32 temps
            if n_pad % cand == 0:
                tn = cand
                break
    d_pad = _round_up(d, _LANE)

    # ---- normalize + fold 1/tau in the wrapper (tiny XLA op) ----------------
    # Removes the serial in-kernel prologue, the resident f32 x, and the xn
    # scratch: the kernel only ever streams matmul_dtype operands.
    inv_sqrt_tau = 1.0 / float(opt.tau) ** 0.5
    x = jnp.concatenate([xi, xj], axis=0).astype(jnp.float32)        # (n, d)
    if opt.normalize:
        sq = jnp.sum(x * x, axis=1, keepdims=True)
        # Per-row clamp (norm >= sqrt(eps)); the torch reference clamps the
        # product norm_i*norm_j >= eps — differs only for ~zero-norm rows.
        x = x * (jax.lax.rsqrt(jnp.maximum(sq, float(opt.eps))) * inv_sqrt_tau)
    else:
        x = x * inv_sqrt_tau
    x = x.astype(matmul_dtype)

    xp = jnp.zeros((n_pad, d_pad), matmul_dtype).at[:n, :d].set(x)   # LHS rows
    xpt = xp.T                                                       # RHS (K, N)

    labf = labels.astype(jnp.float32)
    lab = jnp.full((n_pad,), _PAD_LABEL, jnp.float32)
    lab = lab.at[:b].set(labf).at[b:n].set(labf)
    lab_col = lab[:, None]                                           # (n_pad, 1)
    lab_row = lab[None, :]                                           # (1, n_pad)

    nrb = n_pad // tm
    ncb = n_pad // tn

    kernel = functools.partial(
        _bpc_tile_kernel, half_b=b,
        w_p_in=float(opt.w_p_in), w_p_pooc=float(opt.w_p_pooc),
        w_n_in=float(opt.w_n_in), w_n_pooc=float(opt.w_n_pooc),
        w_n_des=float(opt.w_n_des), w_n_mix=float(opt.w_n_mix))

    # Explicit VMEM budget: double-buffered operand blocks + f32 temporaries
    # + slack; floored at the 32 MiB default, capped at the v7x 64 MiB ceiling.
    mm_b = jnp.dtype(matmul_dtype).itemsize
    vmem_need = (2 * tm * d_pad * mm_b            # LHS row blocks
                 + 2 * d_pad * tn * mm_b          # RHS column blocks
                 + 2 * tm * _LANE * 4 + 2 * 8 * tn * 4   # label blocks (padded)
                 + 8 * tm * tn * 4                # f32 elementwise temporaries
                 + (4 << 20))                     # headroom
    vmem_limit = int(min(max(vmem_need, 32 << 20), 64 << 20))

    o_no, o_de = pl.pallas_call(
        kernel,
        out_shape=(jax.ShapeDtypeStruct((n_pad, 1), jnp.float32),
                   jax.ShapeDtypeStruct((n_pad, 1), jnp.float32)),
        grid_spec=pltpu.PrefetchScalarGridSpec(
            num_scalar_prefetch=0,
            grid=(nrb, ncb),
            in_specs=[
                pl.BlockSpec((tm, 1), lambda r, c: (r, 0)),          # row labels
                pl.BlockSpec((1, tn), lambda r, c: (0, c)),          # col labels
                pl.BlockSpec((tm, d_pad), lambda r, c: (r, 0)),      # LHS rows
                pl.BlockSpec((d_pad, tn), lambda r, c: (0, c)),      # RHS cols
            ],
            out_specs=[
                pl.BlockSpec((tm, 1), lambda r, c: (r, 0)),          # num partials
                pl.BlockSpec((tm, 1), lambda r, c: (r, 0)),          # den partials
            ]),
        compiler_params=pltpu.CompilerParams(
            dimension_semantics=("parallel", "arbitrary"),
            vmem_limit_bytes=vmem_limit),
    )(lab_col, lab_row, xp, xpt)

    num = jnp.sum(o_no)
    den = jnp.sum(o_de)
    return -jnp.log(num / jnp.maximum(den, float(opt.eps)))


# ---------------------------------------------------------------------------
# Pure-JAX reference (mirrors the PyTorch forward; HIGHEST-precision matmul)
# ---------------------------------------------------------------------------
def reference_loss(xi, xj, labels, opt: BatchPairContrastiveLossOption):
    b = labels.shape[0]
    x = jnp.concatenate([xi, xj], axis=0).astype(jnp.float32)
    lab2 = jnp.concatenate([labels, labels], axis=0)[:, None].astype(jnp.float32)
    pair = jnp.maximum(lab2, lab2.T)
    pair = jnp.where((pair >= 2.0) & (pair <= 6.0), 1.0, pair)

    eye_n = jnp.eye(2 * b, dtype=jnp.float32)
    eye_b = jnp.eye(b, dtype=jnp.float32)
    contra = jnp.zeros((2 * b, 2 * b), jnp.float32)
    contra = contra.at[:b, b:].set(eye_b).at[b:, :b].set(eye_b)

    inclass_sample = (pair == 0.0).astype(jnp.float32) * (1.0 - eye_n)
    inclass_mask = inclass_sample * contra
    pooc_mask = inclass_sample * (1.0 - contra)
    des_mask = (pair == 1.0).astype(jnp.float32) * (1.0 - eye_n) * (1.0 - contra)
    mix_mask = (pair == 7.0).astype(jnp.float32) * (1.0 - eye_n) * (1.0 - contra)

    sim = jnp.dot(x, x.T, precision=jax.lax.Precision.HIGHEST)
    if opt.normalize:
        nrm = jnp.linalg.norm(x, axis=1, keepdims=True)
        sim = sim / jnp.maximum(nrm * nrm.T, opt.eps)
    sim = jnp.exp(sim / opt.tau) * (1.0 - eye_n)

    s_in = jnp.sum(sim * inclass_mask)
    s_pooc = jnp.sum(sim * pooc_mask)
    s_des = jnp.sum(sim * des_mask)
    s_mix = jnp.sum(sim * mix_mask)
    loss_no = s_in * opt.w_p_in + s_pooc * opt.w_p_pooc
    loss_deno = (s_in * opt.w_n_in + s_pooc * opt.w_n_pooc
                 + s_des * opt.w_n_des + s_mix * opt.w_n_mix)
    return -jnp.log(loss_no / jnp.maximum(loss_deno, opt.eps))


# ---------------------------------------------------------------------------
if __name__ == "__main__":
    opt = BatchPairContrastiveLossOption()
    key = jax.random.PRNGKey(0)
    k1, k2, k3, k4 = jax.random.split(key, 4)

    # --- small case (B=8, D=32): N=16 padded to 128, single (128,128) tile ---
    B, D = 8, 32
    xi = jax.random.normal(k1, (B, D), dtype=jnp.float32)
    xj = jax.random.normal(k2, (B, D), dtype=jnp.float32)
    labels = jnp.array([0, 0, 0, 1, 0, 7, 0, 1], dtype=jnp.int32)

    loss_bf16 = jax.block_until_ready(
        batch_pair_contrastive_loss(xi, xj, labels, opt))
    loss_f32 = jax.block_until_ready(
        batch_pair_contrastive_loss(xi, xj, labels, opt,
                                    matmul_dtype=jnp.float32))
    ref = reference_loss(xi, xj, labels, opt)

    assert bool(jnp.isfinite(loss_bf16)), f"non-finite loss: {loss_bf16}"
    assert bool(jnp.isfinite(loss_f32)), f"non-finite loss: {loss_f32}"
    # Tolerances reflect bf16 MXU passes (f32 accumulation) vs the HIGHEST-
    # precision reference; the f32-input variant is checked at the same bound.
    assert jnp.allclose(loss_bf16, ref, rtol=2e-2, atol=5e-3), (loss_bf16, ref)
    assert jnp.allclose(loss_f32, ref, rtol=2e-2, atol=5e-3), (loss_f32, ref)

    # --- larger case (B=300, D=200): N=600 -> n_pad=768, tm=256, tn=256,
    #     grid (3, 3) — exercises row + column tiling and padded rows/cols ----
    B2, D2 = 300, 200
    xi2 = jax.random.normal(k3, (B2, D2), dtype=jnp.float32)
    xj2 = jax.random.normal(k4, (B2, D2), dtype=jnp.float32)
    labels2 = jax.random.randint(jax.random.PRNGKey(1), (B2,), 0, 8, jnp.int32)
    labels2 = labels2.at[:8].set(0)   # guarantee positive pairs exist

    loss2 = jax.block_until_ready(
        batch_pair_contrastive_loss(xi2, xj2, labels2, opt))
    ref2 = reference_loss(xi2, xj2, labels2, opt)
    assert bool(jnp.isfinite(loss2)), f"non-finite loss: {loss2}"
    assert jnp.allclose(loss2, ref2, rtol=2e-2, atol=5e-3), (loss2, ref2)

    print("KERNEL_OK")
</pallas_src>

<mosaic_0001>
module attributes {stable_mosaic.version = 11 : i64} {
  func.func @_bpc_tile_kernel(%arg0: i32, %arg1: i32, %arg2: memref<128x1xf32, #tpu.memory_space<vmem>>, %arg3: memref<1x128xf32, #tpu.memory_space<vmem>>, %arg4: memref<128x128xbf16, #tpu.memory_space<vmem>>, %arg5: memref<128x128xbf16, #tpu.memory_space<vmem>>, %arg6: memref<128x1xf32, #tpu.memory_space<vmem>>, %arg7: memref<128x1xf32, #tpu.memory_space<vmem>>) attributes {dimension_semantics = [#tpu.dimension_semantics<parallel>, #tpu.dimension_semantics<arbitrary>], iteration_bounds = array<i64: 1, 1>, scalar_prefetch = 0 : i64, scratch_operands = 0 : i64, tpu.core_type = #tpu.core_type<tc>, window_params = [{transform_indices = @transform_0, window_bounds = array<i64: 128, 1>}, {transform_indices = @transform_1, window_bounds = array<i64: 1, 128>}, {transform_indices = @transform_2, window_bounds = array<i64: 128, 128>}, {transform_indices = @transform_3, window_bounds = array<i64: 128, 128>}, {transform_indices = @transform_4, window_bounds = array<i64: 128, 1>}, {transform_indices = @transform_5, window_bounds = array<i64: 128, 1>}]} {
    %c0_i32 = arith.constant 0 : i32
    %0 = arith.cmpi eq, %arg1, %c0_i32 : i32
    %1 = arith.extui %0 : i1 to i32
    %c0_i32_0 = arith.constant 0 : i32
    %2 = arith.cmpi ne, %1, %c0_i32_0 : i32
    scf.if %2 {
      %cst_32 = arith.constant 0.000000e+00 : f32
      %70 = vector.broadcast %cst_32 : f32 to vector<128x1xf32>
      %c0_33 = arith.constant 0 : index
      %c0_34 = arith.constant 0 : index
      %71 = vector.load %arg6[%c0_33, %c0_34] : memref<128x1xf32, #tpu.memory_space<vmem>>, vector<128x1xf32>
      tpu.vector_store %arg6[%c0_33, %c0_34], %70 {strides = array<i32>} : memref<128x1xf32, #tpu.memory_space<vmem>>, vector<128x1xf32>,
      %cst_35 = arith.constant 0.000000e+00 : f32
      %72 = vector.broadcast %cst_35 : f32 to vector<128x1xf32>
      %c0_36 = arith.constant 0 : index
      %c0_37 = arith.constant 0 : index
      %73 = vector.load %arg7[%c0_36, %c0_37] : memref<128x1xf32, #tpu.memory_space<vmem>>, vector<128x1xf32>
      tpu.vector_store %arg7[%c0_36, %c0_37], %72 {strides = array<i32>} : memref<128x1xf32, #tpu.memory_space<vmem>>, vector<128x1xf32>,
    } else {
    }
    %c0 = arith.constant 0 : index
    %c0_1 = arith.constant 0 : index
    %3 = vector.load %arg4[%c0, %c0_1] : memref<128x128xbf16, #tpu.memory_space<vmem>>, vector<128x128xbf16>
    %c0_2 = arith.constant 0 : index
    %c0_3 = arith.constant 0 : index
    %4 = vector.load %arg5[%c0_2, %c0_3] : memref<128x128xbf16, #tpu.memory_space<vmem>>, vector<128x128xbf16>
    %cst = arith.constant dense<0.000000e+00> : vector<128x128xf32>
    %5 = tpu.matmul %3, %4, %cst {dimension_numbers = #tpu.dot_dimension_numbers<[1], [0], [0], [1], [0, 0, 1, 1], [], []>} : vector<128x128xbf16>, vector<128x128xbf16>, vector<128x128xf32> -> vector<128x128xf32>
    %6 = math.exp %5 : vector<128x128xf32>
    %c0_4 = arith.constant 0 : index
    %c0_5 = arith.constant 0 : index
    %7 = vector.load %arg2[%c0_4, %c0_5] : memref<128x1xf32, #tpu.memory_space<vmem>>, vector<128x1xf32>
    %c0_6 = arith.constant 0 : index
    %c0_7 = arith.constant 0 : index
    %8 = vector.load %arg3[%c0_6, %c0_7] : memref<1x128xf32, #tpu.memory_space<vmem>>, vector<1x128xf32>
    %9 = vector.broadcast %7 : vector<128x1xf32> to vector<128x128xf32>
    %10 = vector.broadcast %8 : vector<1x128xf32> to vector<128x128xf32>
    %11 = arith.maximumf %9, %10 : vector<128x128xf32>
    %c128_i32 = arith.constant 128 : i32
    %12 = arith.muli %arg0, %c128_i32 : i32
    %13 = tpu.iota {dimensions = array<i32: 0>} : vector<128x1xi32>
    %14 = vector.broadcast %12 : i32 to vector<128x1xi32>
    %15 = arith.addi %14, %13 : vector<128x1xi32>
    %c128_i32_8 = arith.constant 128 : i32
    %16 = arith.muli %arg1, %c128_i32_8 : i32
    %17 = tpu.iota {dimensions = array<i32: 1>} : vector<1x128xi32>
    %18 = vector.broadcast %16 : i32 to vector<1x128xi32>
    %19 = arith.addi %18, %17 : vector<1x128xi32>
    %20 = vector.broadcast %15 : vector<128x1xi32> to vector<128x128xi32>
    %21 = vector.broadcast %19 : vector<1x128xi32> to vector<128x128xi32>
    %22 = arith.subi %20, %21 : vector<128x128xi32>
    %cst_9 = arith.constant 0.000000e+00 : f32
    %23 = vector.broadcast %cst_9 : f32 to vector<128x128xf32>
    %24 = arith.cmpf oeq, %11, %23 : vector<128x128xf32>
    %25 = math.absi %22 : vector<128x128xi32>
    %c8_i32 = arith.constant 8 : i32
    %26 = vector.broadcast %c8_i32 : i32 to vector<128x128xi32>
    %27 = arith.cmpi eq, %25, %26 : vector<128x128xi32>
    %c0_i32_10 = arith.constant 0 : i32
    %28 = vector.broadcast %c0_i32_10 : i32 to vector<128x128xi32>
    %29 = arith.cmpi ne, %22, %28 : vector<128x128xi32>
    %cst_11 = arith.constant dense<true> : vector<128x128xi1>
    %30 = arith.xori %27, %cst_11 : vector<128x128xi1>
    %31 = arith.andi %29, %30 : vector<128x128xi1>
    %32 = arith.andi %27, %24 : vector<128x128xi1>
    %33 = arith.andi %31, %24 : vector<128x128xi1>
    %cst_12 = arith.constant 1.000000e+00 : f32
    %34 = vector.broadcast %cst_12 : f32 to vector<128x128xf32>
    %35 = arith.cmpf oge, %11, %34 : vector<128x128xf32>
    %36 = arith.andi %31, %35 : vector<128x128xi1>
    %cst_13 = arith.constant 6.000000e+00 : f32
    %37 = vector.broadcast %cst_13 : f32 to vector<128x128xf32>
    %38 = arith.cmpf ole, %11, %37 : vector<128x128xf32>
    %39 = arith.andi %36, %38 : vector<128x128xi1>
    %cst_14 = arith.constant 7.000000e+00 : f32
    %40 = vector.broadcast %cst_14 : f32 to vector<128x128xf32>
    %41 = arith.cmpf oeq, %11, %40 : vector<128x128xf32>
    %42 = arith.andi %31, %41 : vector<128x128xi1>
    %cst_15 = arith.constant 0.000000e+00 : f32
    %43 = vector.broadcast %cst_15 : f32 to vector<128x128xf32>
    %44 = arith.select %32, %6, %43 : vector<128x128xi1>, vector<128x128xf32>
    %cst_16 = arith.constant 0.000000e+00 : f32
    %45 = vector.broadcast %cst_16 : f32 to vector<128x128xf32>
    %46 = arith.select %33, %6, %45 : vector<128x128xi1>, vector<128x128xf32>
    %cst_17 = arith.constant 5.000000e-01 : f32
    %47 = vector.broadcast %cst_17 : f32 to vector<128x128xf32>
    %48 = arith.mulf %46, %47 : vector<128x128xf32>
    %49 = arith.addf %44, %48 : vector<128x128xf32>
    %cst_18 = arith.constant 0.000000e+00 : f32
    %50 = vector.broadcast %cst_18 : f32 to vector<128x128xf32>
    %51 = arith.select %33, %6, %50 : vector<128x128xi1>, vector<128x128xf32>
    %cst_19 = arith.constant 5.000000e-01 : f32
    %52 = vector.broadcast %cst_19 : f32 to vector<128x128xf32>
    %53 = arith.mulf %51, %52 : vector<128x128xf32>
    %cst_20 = arith.constant 0.000000e+00 : f32
    %54 = vector.broadcast %cst_20 : f32 to vector<128x128xf32>
    %55 = arith.select %39, %6, %54 : vector<128x128xi1>, vector<128x128xf32>
    %56 = arith.addf %53, %55 : vector<128x128xf32>
    %cst_21 = arith.constant 0.000000e+00 : f32
    %57 = vector.broadcast %cst_21 : f32 to vector<128x128xf32>
    %58 = arith.select %42, %6, %57 : vector<128x128xi1>, vector<128x128xf32>
    %59 = arith.addf %56, %58 : vector<128x128xf32>
    %c0_22 = arith.constant 0 : index
    %c0_23 = arith.constant 0 : index
    %60 = vector.load %arg6[%c0_22, %c0_23] : memref<128x1xf32, #tpu.memory_space<vmem>>, vector<128x1xf32>
    %cst_24 = arith.constant dense<0.000000e+00> : vector<128xf32>
    %61 = vector.multi_reduction <add>, %49, %cst_24 [1] : vector<128x128xf32> to vector<128xf32>
    %62 = vector.shape_cast %61 : vector<128xf32> to vector<128x1xf32>
    %63 = arith.addf %60, %62 : vector<128x1xf32>
    %c0_25 = arith.constant 0 : index
    %c0_26 = arith.constant 0 : index
    %64 = vector.load %arg6[%c0_25, %c0_26] : memref<128x1xf32, #tpu.memory_space<vmem>>, vector<128x1xf32>
    tpu.vector_store %arg6[%c0_25, %c0_26], %63 {strides = array<i32>} : memref<128x1xf32, #tpu.memory_space<vmem>>, vector<128x1xf32>,
    %c0_27 = arith.constant 0 : index
    %c0_28 = arith.constant 0 : index
    %65 = vector.load %arg7[%c0_27, %c0_28] : memref<128x1xf32, #tpu.memory_space<vmem>>, vector<128x1xf32>
    %cst_29 = arith.constant dense<0.000000e+00> : vector<128xf32>
    %66 = vector.multi_reduction <add>, %59, %cst_29 [1] : vector<128x128xf32> to vector<128xf32>
    %67 = vector.shape_cast %66 : vector<128xf32> to vector<128x1xf32>
    %68 = arith.addf %65, %67 : vector<128x1xf32>
    %c0_30 = arith.constant 0 : index
    %c0_31 = arith.constant 0 : index
    %69 = vector.load %arg7[%c0_30, %c0_31] : memref<128x1xf32, #tpu.memory_space<vmem>>, vector<128x1xf32>
    tpu.vector_store %arg7[%c0_30, %c0_31], %68 {strides = array<i32>} : memref<128x1xf32, #tpu.memory_space<vmem>>, vector<128x1xf32>,
    return
  }
  func.func @transform_0(%arg0: i32, %arg1: i32) -> (i32, i32) {
    %c0_i32 = arith.constant 0 : i32
    %c0_i32_0 = arith.constant 0 : i32
    return %arg0, %c0_i32 : i32, i32
  }
  func.func @transform_1(%arg0: i32, %arg1: i32) -> (i32, i32) {
    %c0_i32 = arith.constant 0 : i32
    %c0_i32_0 = arith.constant 0 : i32
    return %c0_i32, %arg1 : i32, i32
  }
  func.func @transform_2(%arg0: i32, %arg1: i32) -> (i32, i32) {
    %c0_i32 = arith.constant 0 : i32
    %c0_i32_0 = arith.constant 0 : i32
    return %arg0, %c0_i32 : i32, i32
  }
  func.func @transform_3(%arg0: i32, %arg1: i32) -> (i32, i32) {
    %c0_i32 = arith.constant 0 : i32
    %c0_i32_0 = arith.constant 0 : i32
    return %c0_i32, %arg1 : i32, i32
  }
  func.func @transform_4(%arg0: i32, %arg1: i32) -> (i32, i32) {
    %c0_i32 = arith.constant 0 : i32
    %c0_i32_0 = arith.constant 0 : i32
    return %arg0, %c0_i32 : i32, i32
  }
  func.func @transform_5(%arg0: i32, %arg1: i32) -> (i32, i32) {
    %c0_i32 = arith.constant 0 : i32
    %c0_i32_0 = arith.constant 0 : i32
    return %arg0, %c0_i32 : i32, i32
  }
}

</mosaic_0001>

<llo_original>
// kernel: tpu_custom_call.1
$region0: #{tpu_custom_call.1}
  #allocation0 [shape = 'u32[]', space=smem, size = 0x4, offset = 0x4, fixed_abs, tag = 'smem constant byte address 0x4 - core index']
  #allocation1 [shape = 'u32[72,128]{1,0:T(1,128)}', space=vmem, size = 0x9000, scoped, tag = 'internal scratch']
  %s0 = inlined_call_operand.vmem [shape: f32[128,1], index: 0, kind: input, shape index: {}]
  %s1 = inlined_call_operand.vmem [shape: f32[1,128], index: 1, kind: input, shape index: {}]
  %s2 = inlined_call_operand.vmem [shape: bf16[128,128], index: 2, kind: input, shape index: {}]
  %s3 = inlined_call_operand.vmem [shape: bf16[128,128], index: 3, kind: input, shape index: {}]
  %s4 = inlined_call_operand.vmem [shape: f32[128,1], index: 4, kind: output, shape index: {0}]
  %s5 = inlined_call_operand.vmem [shape: f32[128,1], index: 5, kind: output, shape index: {1}]
  %6 = xla_tuple %s4, %s5
  %s7 = sld [smem:[#allocation0]]
  $region38: #{tpu_custom_call.1} parent=0
    _
  %s9 = ssub.s32 1, %s7
  %s10 = scalar_select 0, %s9, %s7
  // Predicated region
  $region2: #{tpu_custom_call.1} parent=0 // pred_check
    _
  $region3: #{tpu_custom_call.1} parent=0 // pred_check_branch
    %12 = sbr.rel (0) target = $region5
  $region4: #{tpu_custom_call.1} parent=0 // pred_region
    _
  $region5: #{tpu_custom_call.1} parent=0 // pred_fallthru
    _
  // Predicated region
  $region6: #{tpu_custom_call.1} parent=0 // pred_check
    _
  $region7: #{tpu_custom_call.1} parent=0 // pred_check_branch
    %14 = sbr.rel (0) target = $region9
  $region8: #{tpu_custom_call.1} parent=0 // pred_region
    _
  $region9: #{tpu_custom_call.1} parent=0 // pred_fallthru
    _
  // Predicated region
  $region10: #{tpu_custom_call.1} parent=0 // pred_check
    _
  $region11: #{tpu_custom_call.1} parent=0 // pred_check_branch
    %16 = sbr.rel (0) target = $region13
  $region12: #{tpu_custom_call.1} parent=0 // pred_region
    _
  $region13: #{tpu_custom_call.1} parent=0 // pred_fallthru
    _
  // Predicated region
  $region14: #{tpu_custom_call.1} parent=0 // pred_check
    _
  $region15: #{tpu_custom_call.1} parent=0 // pred_check_branch
    %18 = sbr.rel (0) target = $region17
  $region16: #{tpu_custom_call.1} parent=0 // pred_region
    _
  $region17: #{tpu_custom_call.1} parent=0 // pred_fallthru
    _
  %p19 = scmp.eq.s32.totalorder 0, 0
  // Predicated region
  $region18: #{tpu_custom_call.1} parent=0 // pred_check
    %p20 = pneg %p19
  $region19: #{tpu_custom_call.1} parent=0 // pred_check_branch
    %22 = sbr.rel (%p20) target = $region21
  $region20: #{tpu_custom_call.1} parent=0 // pred_region
    %vm23 = vcmask 7168
    %24 = vst.msk [vmem:[%s4] sm:$0xff] %vm23, 0.0
    %25 = vst.msk [vmem:[%s4 + $0x8] sm:$0xff] %vm23, 0.0
    %26 = vst.msk [vmem:[%s4 + $0x10] sm:$0xff] %vm23, 0.0
    %27 = vst.msk [vmem:[%s4 + $0x18] sm:$0xff] %vm23, 0.0
    %28 = vst.msk [vmem:[%s4 + $0x20] sm:$0xff] %vm23, 0.0
    %29 = vst.msk [vmem:[%s4 + $0x28] sm:$0xff] %vm23, 0.0
    %30 = vst.msk [vmem:[%s4 + $0x30] sm:$0xff] %vm23, 0.0
    %31 = vst.msk [vmem:[%s4 + $0x38] sm:$0xff] %vm23, 0.0
    %32 = vst.msk [vmem:[%s4 + $0x40] sm:$0xff] %vm23, 0.0
    %33 = vst.msk [vmem:[%s4 + $0x48] sm:$0xff] %vm23, 0.0
    %34 = vst.msk [vmem:[%s4 + $0x50] sm:$0xff] %vm23, 0.0
    %35 = vst.msk [vmem:[%s4 + $0x58] sm:$0xff] %vm23, 0.0
    %36 = vst.msk [vmem:[%s4 + $0x60] sm:$0xff] %vm23, 0.0
    %37 = vst.msk [vmem:[%s4 + $0x68] sm:$0xff] %vm23, 0.0
    %38 = vst.msk [vmem:[%s4 + $0x70] sm:$0xff] %vm23, 0.0
    %39 = vst.msk [vmem:[%s4 + $0x78] sm:$0xff] %vm23, 0.0
    %40 = vst.msk [vmem:[%s5] sm:$0xff] %vm23, 0.0
    %41 = vst.msk [vmem:[%s5 + $0x8] sm:$0xff] %vm23, 0.0
    %42 = vst.msk [vmem:[%s5 + $0x10] sm:$0xff] %vm23, 0.0
    %43 = vst.msk [vmem:[%s5 + $0x18] sm:$0xff] %vm23, 0.0
    %44 = vst.msk [vmem:[%s5 + $0x20] sm:$0xff] %vm23, 0.0
    %45 = vst.msk [vmem:[%s5 + $0x28] sm:$0xff] %vm23, 0.0
    %46 = vst.msk [vmem:[%s5 + $0x30] sm:$0xff] %vm23, 0.0
    %47 = vst.msk [vmem:[%s5 + $0x38] sm:$0xff] %vm23, 0.0
    %48 = vst.msk [vmem:[%s5 + $0x40] sm:$0xff] %vm23, 0.0
    %49 = vst.msk [vmem:[%s5 + $0x48] sm:$0xff] %vm23, 0.0
    %50 = vst.msk [vmem:[%s5 + $0x50] sm:$0xff] %vm23, 0.0
    %51 = vst.msk [vmem:[%s5 + $0x58] sm:$0xff] %vm23, 0.0
    %52 = vst.msk [vmem:[%s5 + $0x60] sm:$0xff] %vm23, 0.0
    %53 = vst.msk [vmem:[%s5 + $0x68] sm:$0xff] %vm23, 0.0
    %54 = vst.msk [vmem:[%s5 + $0x70] sm:$0xff] %vm23, 0.0
    %55 = vst.msk [vmem:[%s5 + $0x78] sm:$0xff] %vm23, 0.0
  $region21: #{tpu_custom_call.1} parent=0 // pred_fallthru
    _
  %v56 = vld [vmem:[%s2] sm:$0xf]
  %v57 = vld [vmem:[%s2 + $0x4] sm:$0xf]
  %v58 = vld [vmem:[%s2 + $0x8] sm:$0xf]
  %v59 = vld [vmem:[%s2 + $0xc] sm:$0xf]
  %v60 = vld [vmem:[%s2 + $0x10] sm:$0xf]
  %v61 = vld [vmem:[%s2 + $0x14] sm:$0xf]
  %v62 = vld [vmem:[%s2 + $0x18] sm:$0xf]
  %v63 = vld [vmem:[%s2 + $0x1c] sm:$0xf]
  %v64 = vld [vmem:[%s2 + $0x20] sm:$0xf]
  %v65 = vld [vmem:[%s2 + $0x24] sm:$0xf]
  %v66 = vld [vmem:[%s2 + $0x28] sm:$0xf]
  %v67 = vld [vmem:[%s2 + $0x2c] sm:$0xf]
  %v68 = vld [vmem:[%s2 + $0x30] sm:$0xf]
  %v69 = vld [vmem:[%s2 + $0x34] sm:$0xf]
  %v70 = vld [vmem:[%s2 + $0x38] sm:$0xf]
  %v71 = vld [vmem:[%s2 + $0x3c] sm:$0xf]
  %v72 = vld [vmem:[%s3] sm:$0xf]
  %v73 = vld [vmem:[%s3 + $0x4] sm:$0xf]
  %v74 = vld [vmem:[%s3 + $0x8] sm:$0xf]
  %v75 = vld [vmem:[%s3 + $0xc] sm:$0xf]
  %v76 = vld [vmem:[%s3 + $0x10] sm:$0xf]
  %v77 = vld [vmem:[%s3 + $0x14] sm:$0xf]
  %v78 = vld [vmem:[%s3 + $0x18] sm:$0xf]
  %v79 = vld [vmem:[%s3 + $0x1c] sm:$0xf]
  %v80 = vld [vmem:[%s3 + $0x20] sm:$0xf]
  %v81 = vld [vmem:[%s3 + $0x24] sm:$0xf]
  %v82 = vld [vmem:[%s3 + $0x28] sm:$0xf]
  %v83 = vld [vmem:[%s3 + $0x2c] sm:$0xf]
  %v84 = vld [vmem:[%s3 + $0x30] sm:$0xf]
  %v85 = vld [vmem:[%s3 + $0x34] sm:$0xf]
  %v86 = vld [vmem:[%s3 + $0x38] sm:$0xf]
  %v87 = vld [vmem:[%s3 + $0x3c] sm:$0xf]
  %v104 = vunpack.c.l.b16 %v56
  %v105 = vunpack.c.l.b16 %v57
  %v106 = vunpack.c.l.b16 %v58
  %v107 = vunpack.c.l.b16 %v59
  %v108 = vunpack.c.l.b16 %v60
  %v109 = vunpack.c.l.b16 %v61
  %v110 = vunpack.c.l.b16 %v62
  %v111 = vunpack.c.l.b16 %v63
  %v112 = vunpack.c.l.b16 %v64
  %v113 = vunpack.c.l.b16 %v65
  %v114 = vunpack.c.l.b16 %v66
  %v115 = vunpack.c.l.b16 %v67
  %v116 = vunpack.c.l.b16 %v68
  %v117 = vunpack.c.l.b16 %v69
  %v118 = vunpack.c.l.b16 %v70
  %v119 = vunpack.c.l.b16 %v71
  %v120 = vpack.c.b16 %v105, %v104
  %v121 = vpack.c.b16 %v107, %v106
  %v122 = vpack.c.b16 %v109, %v108
  %v123 = vpack.c.b16 %v111, %v110
  %v124 = vpack.c.b16 %v113, %v112
  %v125 = vpack.c.b16 %v115, %v114
  %v126 = vpack.c.b16 %v117, %v116
  %v127 = vpack.c.b16 %v119, %v118
  %v152 = vunpack.c.l.b16 %v72
  %v153 = vunpack.c.l.b16 %v73
  %v154 = vunpack.c.l.b16 %v74
  %v155 = vunpack.c.l.b16 %v75
  %v156 = vunpack.c.l.b16 %v76
  %v157 = vunpack.c.l.b16 %v77
  %v158 = vunpack.c.l.b16 %v78
  %v159 = vunpack.c.l.b16 %v79
  %v160 = vunpack.c.l.b16 %v80
  %v161 = vunpack.c.l.b16 %v81
  %v162 = vunpack.c.l.b16 %v82
  %v163 = vunpack.c.l.b16 %v83
  %v164 = vunpack.c.l.b16 %v84
  %v165 = vunpack.c.l.b16 %v85
  %v166 = vunpack.c.l.b16 %v86
  %v167 = vunpack.c.l.b16 %v87
  %v168 = vpack.c.b16 %v153, %v152
  %v169 = vpack.c.b16 %v155, %v154
  %v170 = vpack.c.b16 %v157, %v156
  %v171 = vpack.c.b16 %v159, %v158
  %v172 = vpack.c.b16 %v161, %v160
  %v173 = vpack.c.b16 %v163, %v162
  %v174 = vpack.c.b16 %v165, %v164
  %v175 = vpack.c.b16 %v167, %v166
  %184 = vmatpush.bf16.msra.mxu0 %v175
  %185 = vmatpush.bf16.msra.mxu0 %v174
  %186 = vmatpush.bf16.msra.mxu0 %v173
  %187 = vmatpush.bf16.msra.mxu0 %v172
  %188 = vmatpush.bf16.msra.mxu0 %v171
  %189 = vmatpush.bf16.msra.mxu0 %v170
  %190 = vmatpush.bf16.msra.mxu0 %v169
  %191 = vmatpush.bf16.msra.mxu0 %v168
  %192 = vmatmul.bf16.gmra.mxu0 %v120
  %v193 = vpop.f32.mrf.mxu0
  %v194 = vadd.f32 0.0, %v193
  %v195 = vpop.f32.mrf.mxu0
  %v196 = vadd.f32 0.0, %v195
  %197 = vmatmul.bf16.gmra.mxu0 %v121
  %v198 = vpop.f32.mrf.mxu0
  %v199 = vadd.f32 0.0, %v198
  %v200 = vpop.f32.mrf.mxu0
  %v201 = vadd.f32 0.0, %v200
  %202 = vmatmul.bf16.gmra.mxu0 %v122
  %v203 = vpop.f32.mrf.mxu0
  %v204 = vadd.f32 0.0, %v203
  %v205 = vpop.f32.mrf.mxu0
  %v206 = vadd.f32 0.0, %v205
  %207 = vmatmul.bf16.gmra.mxu0 %v123
  %v208 = vpop.f32.mrf.mxu0
  %v209 = vadd.f32 0.0, %v208
  %v210 = vpop.f32.mrf.mxu0
  %v211 = vadd.f32 0.0, %v210
  %212 = vmatmul.bf16.gmra.mxu0 %v124
  %v213 = vpop.f32.mrf.mxu0
  %v214 = vadd.f32 0.0, %v213
  %v215 = vpop.f32.mrf.mxu0
  %v216 = vadd.f32 0.0, %v215
  %217 = vmatmul.bf16.gmra.mxu0 %v125
  %v218 = vpop.f32.mrf.mxu0
  %v219 = vadd.f32 0.0, %v218
  %v220 = vpop.f32.mrf.mxu0
  %v221 = vadd.f32 0.0, %v220
  %222 = vmatmul.bf16.gmra.mxu0 %v126
  %v223 = vpop.f32.mrf.mxu0
  %v224 = vadd.f32 0.0, %v223
  %v225 = vpop.f32.mrf.mxu0
  %v226 = vadd.f32 0.0, %v225
  %227 = vmatmul.bf16.gmra.mxu0 %v127
  %v228 = vpop.f32.mrf.mxu0
  %v229 = vadd.f32 0.0, %v228
  %v230 = vpop.f32.mrf.mxu0
  %v231 = vadd.f32 0.0, %v230
  %232 = vdwg.mxu0
  %v233 = vmul.f32 %v194, 1.442695
  %v234 = vpow.pop %v233
  %v235 = vmul.f32 %v196, 1.442695
  %v236 = vpow.pop %v235
  %v237 = vmul.f32 %v199, 1.442695
  %v238 = vpow.pop %v237
  %v239 = vmul.f32 %v201, 1.442695
  %v240 = vpow.pop %v239
  %v241 = vmul.f32 %v204, 1.442695
  %v242 = vpow.pop %v241
  %v243 = vmul.f32 %v206, 1.442695
  %v244 = vpow.pop %v243
  %v245 = vmul.f32 %v209, 1.442695
  %v246 = vpow.pop %v245
  %v247 = vmul.f32 %v211, 1.442695
  %v248 = vpow.pop %v247
  %v249 = vmul.f32 %v214, 1.442695
  %v250 = vpow.pop %v249
  %v251 = vmul.f32 %v216, 1.442695
  %v252 = vpow.pop %v251
  %v253 = vmul.f32 %v219, 1.442695
  %v254 = vpow.pop %v253
  %v255 = vmul.f32 %v221, 1.442695
  %v256 = vpow.pop %v255
  %v257 = vmul.f32 %v224, 1.442695
  %v258 = vpow.pop %v257
  %v259 = vmul.f32 %v226, 1.442695
  %v260 = vpow.pop %v259
  %v261 = vmul.f32 %v229, 1.442695
  %v262 = vpow.pop %v261
  %v263 = vmul.f32 %v231, 1.442695
  %v264 = vpow.pop %v263
  %v265 = vld [vmem:[%s0] sm:$0xff]
  %v266 = vld [vmem:[%s0 + $0x8] sm:$0xff]
  %v267 = vld [vmem:[%s0 + $0x10] sm:$0xff]
  %v268 = vld [vmem:[%s0 + $0x18] sm:$0xff]
  %v269 = vld [vmem:[%s0 + $0x20] sm:$0xff]
  %v270 = vld [vmem:[%s0 + $0x28] sm:$0xff]
  %v271 = vld [vmem:[%s0 + $0x30] sm:$0xff]
  %v272 = vld [vmem:[%s0 + $0x38] sm:$0xff]
  %v273 = vld [vmem:[%s0 + $0x40] sm:$0xff]
  %v274 = vld [vmem:[%s0 + $0x48] sm:$0xff]
  %v275 = vld [vmem:[%s0 + $0x50] sm:$0xff]
  %v276 = vld [vmem:[%s0 + $0x58] sm:$0xff]
  %v277 = vld [vmem:[%s0 + $0x60] sm:$0xff]
  %v278 = vld [vmem:[%s0 + $0x68] sm:$0xff]
  %v279 = vld [vmem:[%s0 + $0x70] sm:$0xff]
  %v280 = vld [vmem:[%s0 + $0x78] sm:$0xff]
  %v281 = vld [vmem:[%s1] sm:$0x1]
  %283 = vset.pattern.permute.xlu0 0
  %284 = vperm.xlu0 %283, %v265
  %v285 = vpop.permute.xlu0 %284
  %288 = vset.pattern.permute.xlu0 0
  %289 = vperm.xlu0 %288, %v266
  %v290 = vpop.permute.xlu0 %289
  %293 = vset.pattern.permute.xlu0 0
  %294 = vperm.xlu0 %293, %v267
  %v295 = vpop.permute.xlu0 %294
  %298 = vset.pattern.permute.xlu0 0
  %299 = vperm.xlu0 %298, %v268
  %v300 = vpop.permute.xlu0 %299
  %303 = vset.pattern.permute.xlu0 0
  %304 = vperm.xlu0 %303, %v269
  %v305 = vpop.permute.xlu0 %304
  %308 = vset.pattern.permute.xlu0 0
  %309 = vperm.xlu0 %308, %v270
  %v310 = vpop.permute.xlu0 %309
  %313 = vset.pattern.permute.xlu0 0
  %314 = vperm.xlu0 %313, %v271
  %v315 = vpop.permute.xlu0 %314
  %318 = vset.pattern.permute.xlu0 0
  %319 = vperm.xlu0 %318, %v272
  %v320 = vpop.permute.xlu0 %319
  %323 = vset.pattern.permute.xlu0 0
  %324 = vperm.xlu0 %323, %v273
  %v325 = vpop.permute.xlu0 %324
  %328 = vset.pattern.permute.xlu0 0
  %329 = vperm.xlu0 %328, %v274
  %v330 = vpop.permute.xlu0 %329
  %333 = vset.pattern.permute.xlu0 0
  %334 = vperm.xlu0 %333, %v275
  %v335 = vpop.permute.xlu0 %334
  %338 = vset.pattern.permute.xlu0 0
  %339 = vperm.xlu0 %338, %v276
  %v340 = vpop.permute.xlu0 %339
  %343 = vset.pattern.permute.xlu0 0
  %344 = vperm.xlu0 %343, %v277
  %v345 = vpop.permute.xlu0 %344
  %348 = vset.pattern.permute.xlu0 0
  %349 = vperm.xlu0 %348, %v278
  %v350 = vpop.permute.xlu0 %349
  %353 = vset.pattern.permute.xlu0 0
  %354 = vperm.xlu0 %353, %v279
  %v355 = vpop.permute.xlu0 %354
  %358 = vset.pattern.permute.xlu0 0
  %359 = vperm.xlu0 %358, %v280
  %v360 = vpop.permute.xlu0 %359
  %v363 = vperm.slane %v281, 0
  %v365 = vmax.f32 %v285, %v363
  %v366 = vmax.f32 %v290, %v363
  %v367 = vmax.f32 %v295, %v363
  %v368 = vmax.f32 %v300, %v363
  %v369 = vmax.f32 %v305, %v363
  %v370 = vmax.f32 %v310, %v363
  %v371 = vmax.f32 %v315, %v363
  %v372 = vmax.f32 %v320, %v363
  %v373 = vmax.f32 %v325, %v363
  %v374 = vmax.f32 %v330, %v363
  %v375 = vmax.f32 %v335, %v363
  %v376 = vmax.f32 %v340, %v363
  %v377 = vmax.f32 %v345, %v363
  %v378 = vmax.f32 %v350, %v363
  %v379 = vmax.f32 %v355, %v363
  %v380 = vmax.f32 %v360, %v363
  %s381 = smul.u32 0, 128
  %v382 = vlaneseq
  %v383 = vshrl.u32 %v382, 7
  %v384 = vadd.s32 %v383, 8
  %v385 = vadd.s32 %v383, 16
  %v386 = vadd.s32 %v383, 24
  %v387 = vadd.s32 %v383, 32
  %v388 = vadd.s32 %v383, 40
  %v389 = vadd.s32 %v383, 48
  %v390 = vadd.s32 %v383, 56
  %v391 = vadd.s32 %v383, 64
  %v392 = vadd.s32 %v383, 72
  %v393 = vadd.s32 %v383, 80
  %v394 = vadd.s32 %v383, 88
  %v395 = vadd.s32 %v383, 96
  %v396 = vadd.s32 %v383, 104
  %v397 = vadd.s32 %v383, 112
  %v398 = vadd.s32 %v383, 120
  %v399 = vstv %s381
  %v400 = vadd.s32 %v399, %v383
  %v401 = vadd.s32 %v399, %v384
  %v402 = vadd.s32 %v399, %v385
  %v403 = vadd.s32 %v399, %v386
  %v404 = vadd.s32 %v399, %v387
  %v405 = vadd.s32 %v399, %v388
  %v406 = vadd.s32 %v399, %v389
  %v407 = vadd.s32 %v399, %v390
  %v408 = vadd.s32 %v399, %v391
  %v409 = vadd.s32 %v399, %v392
  %v410 = vadd.s32 %v399, %v393
  %v411 = vadd.s32 %v399, %v394
  %v412 = vadd.s32 %v399, %v395
  %v413 = vadd.s32 %v399, %v396
  %v414 = vadd.s32 %v399, %v397
  %v415 = vadd.s32 %v399, %v398
  %s416 = smul.u32 0, 128
  %v417 = vlaneseq
  %v418 = vand.u32 %v417, 127
  %v419 = vstv %s416
  %v420 = vadd.s32 %v419, %v418
  %v421 = vsub.s32 %v400, %v420
  %v422 = vsub.s32 %v401, %v420
  %v423 = vsub.s32 %v402, %v420
  %v424 = vsub.s32 %v403, %v420
  %v425 = vsub.s32 %v404, %v420
  %v426 = vsub.s32 %v405, %v420
  %v427 = vsub.s32 %v406, %v420
  %v428 = vsub.s32 %v407, %v420
  %v429 = vsub.s32 %v408, %v420
  %v430 = vsub.s32 %v409, %v420
  %v431 = vsub.s32 %v410, %v420
  %v432 = vsub.s32 %v411, %v420
  %v433 = vsub.s32 %v412, %v420
  %v434 = vsub.s32 %v413, %v420
  %v435 = vsub.s32 %v414, %v420
  %v436 = vsub.s32 %v415, %v420
  %vm437 = vcmp.eq.f32.partialorder %v365, 0.0
  %vm438 = vcmp.eq.f32.partialorder %v366, 0.0
  %vm439 = vcmp.eq.f32.partialorder %v367, 0.0
  %vm440 = vcmp.eq.f32.partialorder %v368, 0.0
  %vm441 = vcmp.eq.f32.partialorder %v369, 0.0
  %vm442 = vcmp.eq.f32.partialorder %v370, 0.0
  %vm443 = vcmp.eq.f32.partialorder %v371, 0.0
  %vm444 = vcmp.eq.f32.partialorder %v372, 0.0
  %vm445 = vcmp.eq.f32.partialorder %v373, 0.0
  %vm446 = vcmp.eq.f32.partialorder %v374, 0.0
  %vm447 = vcmp.eq.f32.partialorder %v375, 0.0
  %vm448 = vcmp.eq.f32.partialorder %v376, 0.0
  %vm449 = vcmp.eq.f32.partialorder %v377, 0.0
  %vm450 = vcmp.eq.f32.partialorder %v378, 0.0
  %vm451 = vcmp.eq.f32.partialorder %v379, 0.0
  %vm452 = vcmp.eq.f32.partialorder %v380, 0.0
  %vm453 = vcmp.lt.s32.totalorder %v421, 0
  %v454 = vsub.s32 0, %v421
  %v455 = vsel %vm453, %v454, %v421
  %vm456 = vcmp.lt.s32.totalorder %v422, 0
  %v457 = vsub.s32 0, %v422
  %v458 = vsel %vm456, %v457, %v422
  %vm459 = vcmp.lt.s32.totalorder %v423, 0
  %v460 = vsub.s32 0, %v423
  %v461 = vsel %vm459, %v460, %v423
  %vm462 = vcmp.lt.s32.totalorder %v424, 0
  %v463 = vsub.s32 0, %v424
  %v464 = vsel %vm462, %v463, %v424
  %vm465 = vcmp.lt.s32.totalorder %v425, 0
  %v466 = vsub.s32 0, %v425
  %v467 = vsel %vm465, %v466, %v425
  %vm468 = vcmp.lt.s32.totalorder %v426, 0
  %v469 = vsub.s32 0, %v426
  %v470 = vsel %vm468, %v469, %v426
  %vm471 = vcmp.lt.s32.totalorder %v427, 0
  %v472 = vsub.s32 0, %v427
  %v473 = vsel %vm471, %v472, %v427
  %vm474 = vcmp.lt.s32.totalorder %v428, 0
  %v475 = vsub.s32 0, %v428
  %v476 = vsel %vm474, %v475, %v428
  %vm477 = vcmp.lt.s32.totalorder %v429, 0
  %v478 = vsub.s32 0, %v429
  %v479 = vsel %vm477, %v478, %v429
  %vm480 = vcmp.lt.s32.totalorder %v430, 0
  %v481 = vsub.s32 0, %v430
  %v482 = vsel %vm480, %v481, %v430
  %vm483 = vcmp.lt.s32.totalorder %v431, 0
  %v484 = vsub.s32 0, %v431
  %v485 = vsel %vm483, %v484, %v431
  %vm486 = vcmp.lt.s32.totalorder %v432, 0
  %v487 = vsub.s32 0, %v432
  %v488 = vsel %vm486, %v487, %v432
  %vm489 = vcmp.lt.s32.totalorder %v433, 0
  %v490 = vsub.s32 0, %v433
  %v491 = vsel %vm489, %v490, %v433
  %vm492 = vcmp.lt.s32.totalorder %v434, 0
  %v493 = vsub.s32 0, %v434
  %v494 = vsel %vm492, %v493, %v434
  %vm495 = vcmp.lt.s32.totalorder %v435, 0
  %v496 = vsub.s32 0, %v435
  %v497 = vsel %vm495, %v496, %v435
  %vm498 = vcmp.lt.s32.totalorder %v436, 0
  %v499 = vsub.s32 0, %v436
  %v500 = vsel %vm498, %v499, %v436
  %vm501 = vcmp.eq.s32.totalorder %v455, 8
  %vm502 = vcmp.eq.s32.totalorder %v458, 8
  %vm503 = vcmp.eq.s32.totalorder %v461, 8
  %vm504 = vcmp.eq.s32.totalorder %v464, 8
  %vm505 = vcmp.eq.s32.totalorder %v467, 8
  %vm506 = vcmp.eq.s32.totalorder %v470, 8
  %vm507 = vcmp.eq.s32.totalorder %v473, 8
  %vm508 = vcmp.eq.s32.totalorder %v476, 8
  %vm509 = vcmp.eq.s32.totalorder %v479, 8
  %vm510 = vcmp.eq.s32.totalorder %v482, 8
  %vm511 = vcmp.eq.s32.totalorder %v485, 8
  %vm512 = vcmp.eq.s32.totalorder %v488, 8
  %vm513 = vcmp.eq.s32.totalorder %v491, 8
  %vm514 = vcmp.eq.s32.totalorder %v494, 8
  %vm515 = vcmp.eq.s32.totalorder %v497, 8
  %vm516 = vcmp.eq.s32.totalorder %v500, 8
  %vm517 = vcmp.ne.s32.totalorder %v421, 0
  %vm518 = vcmp.ne.s32.totalorder %v422, 0
  %vm519 = vcmp.ne.s32.totalorder %v423, 0
  %vm520 = vcmp.ne.s32.totalorder %v424, 0
  %vm521 = vcmp.ne.s32.totalorder %v425, 0
  %vm522 = vcmp.ne.s32.totalorder %v426, 0
  %vm523 = vcmp.ne.s32.totalorder %v427, 0
  %vm524 = vcmp.ne.s32.totalorder %v428, 0
  %vm525 = vcmp.ne.s32.totalorder %v429, 0
  %vm526 = vcmp.ne.s32.totalorder %v430, 0
  %vm527 = vcmp.ne.s32.totalorder %v431, 0
  %vm528 = vcmp.ne.s32.totalorder %v432, 0
  %vm529 = vcmp.ne.s32.totalorder %v433, 0
  %vm530 = vcmp.ne.s32.totalorder %v434, 0
  %vm531 = vcmp.ne.s32.totalorder %v435, 0
  %vm532 = vcmp.ne.s32.totalorder %v436, 0
  %vm533 = vmxor %vm501, 1
  %vm534 = vmxor %vm502, 1
  %vm535 = vmxor %vm503, 1
  %vm536 = vmxor %vm504, 1
  %vm537 = vmxor %vm505, 1
  %vm538 = vmxor %vm506, 1
  %vm539 = vmxor %vm507, 1
  %vm540 = vmxor %vm508, 1
  %vm541 = vmxor %vm509, 1
  %vm542 = vmxor %vm510, 1
  %vm543 = vmxor %vm511, 1
  %vm544 = vmxor %vm512, 1
  %vm545 = vmxor %vm513, 1
  %vm546 = vmxor %vm514, 1
  %vm547 = vmxor %vm515, 1
  %vm548 = vmxor %vm516, 1
  %vm549 = vmand %vm517, %vm533
  %vm550 = vmand %vm518, %vm534
  %vm551 = vmand %vm519, %vm535
  %vm552 = vmand %vm520, %vm536
  %vm553 = vmand %vm521, %vm537
  %vm554 = vmand %vm522, %vm538
  %vm555 = vmand %vm523, %vm539
  %vm556 = vmand %vm524, %vm540
  %vm557 = vmand %vm525, %vm541
  %vm558 = vmand %vm526, %vm542
  %vm559 = vmand %vm527, %vm543
  %vm560 = vmand %vm528, %vm544
  %vm561 = vmand %vm529, %vm545
  %vm562 = vmand %vm530, %vm546
  %vm563 = vmand %vm531, %vm547
  %vm564 = vmand %vm532, %vm548
  %vm565 = vmand %vm501, %vm437
  %vm566 = vmand %vm502, %vm438
  %vm567 = vmand %vm503, %vm439
  %vm568 = vmand %vm504, %vm440
  %vm569 = vmand %vm505, %vm441
  %vm570 = vmand %vm506, %vm442
  %vm571 = vmand %vm507, %vm443
  %vm572 = vmand %vm508, %vm444
  %vm573 = vmand %vm509, %vm445
  %vm574 = vmand %vm510, %vm446
  %vm575 = vmand %vm511, %vm447
  %vm576 = vmand %vm512, %vm448
  %vm577 = vmand %vm513, %vm449
  %vm578 = vmand %vm514, %vm450
  %vm579 = vmand %vm515, %vm451
  %vm580 = vmand %vm516, %vm452
  %vm581 = vmand %vm549, %vm437
  %vm582 = vmand %vm550, %vm438
  %vm583 = vmand %vm551, %vm439
  %vm584 = vmand %vm552, %vm440
  %vm585 = vmand %vm553, %vm441
  %vm586 = vmand %vm554, %vm442
  %vm587 = vmand %vm555, %vm443
  %vm588 = vmand %vm556, %vm444
  %vm589 = vmand %vm557, %vm445
  %vm590 = vmand %vm558, %vm446
  %vm591 = vmand %vm559, %vm447
  %vm592 = vmand %vm560, %vm448
  %vm593 = vmand %vm561, %vm449
  %vm594 = vmand %vm562, %vm450
  %vm595 = vmand %vm563, %vm451
  %vm596 = vmand %vm564, %vm452
  %vm597 = vcmp.ge.f32.partialorder %v365, 1.0
  %vm598 = vcmp.ge.f32.partialorder %v366, 1.0
  %vm599 = vcmp.ge.f32.partialorder %v367, 1.0
  %vm600 = vcmp.ge.f32.partialorder %v368, 1.0
  %vm601 = vcmp.ge.f32.partialorder %v369, 1.0
  %vm602 = vcmp.ge.f32.partialorder %v370, 1.0
  %vm603 = vcmp.ge.f32.partialorder %v371, 1.0
  %vm604 = vcmp.ge.f32.partialorder %v372, 1.0
  %vm605 = vcmp.ge.f32.partialorder %v373, 1.0
  %vm606 = vcmp.ge.f32.partialorder %v374, 1.0
  %vm607 = vcmp.ge.f32.partialorder %v375, 1.0
  %vm608 = vcmp.ge.f32.partialorder %v376, 1.0
  %vm609 = vcmp.ge.f32.partialorder %v377, 1.0
  %vm610 = vcmp.ge.f32.partialorder %v378, 1.0
  %vm611 = vcmp.ge.f32.partialorder %v379, 1.0
  %vm612 = vcmp.ge.f32.partialorder %v380, 1.0
  %vm613 = vmand %vm549, %vm597
  %vm614 = vmand %vm550, %vm598
  %vm615 = vmand %vm551, %vm599
  %vm616 = vmand %vm552, %vm600
  %vm617 = vmand %vm553, %vm601
  %vm618 = vmand %vm554, %vm602
  %vm619 = vmand %vm555, %vm603
  %vm620 = vmand %vm556, %vm604
  %vm621 = vmand %vm557, %vm605
  %vm622 = vmand %vm558, %vm606
  %vm623 = vmand %vm559, %vm607
  %vm624 = vmand %vm560, %vm608
  %vm625 = vmand %vm561, %vm609
  %vm626 = vmand %vm562, %vm610
  %vm627 = vmand %vm563, %vm611
  %vm628 = vmand %vm564, %vm612
  %vm629 = vcmp.le.f32.partialorder %v365, 6.0
  %vm630 = vcmp.le.f32.partialorder %v366, 6.0
  %vm631 = vcmp.le.f32.partialorder %v367, 6.0
  %vm632 = vcmp.le.f32.partialorder %v368, 6.0
  %vm633 = vcmp.le.f32.partialorder %v369, 6.0
  %vm634 = vcmp.le.f32.partialorder %v370, 6.0
  %vm635 = vcmp.le.f32.partialorder %v371, 6.0
  %vm636 = vcmp.le.f32.partialorder %v372, 6.0
  %vm637 = vcmp.le.f32.partialorder %v373, 6.0
  %vm638 = vcmp.le.f32.partialorder %v374, 6.0
  %vm639 = vcmp.le.f32.partialorder %v375, 6.0
  %vm640 = vcmp.le.f32.partialorder %v376, 6.0
  %vm641 = vcmp.le.f32.partialorder %v377, 6.0
  %vm642 = vcmp.le.f32.partialorder %v378, 6.0
  %vm643 = vcmp.le.f32.partialorder %v379, 6.0
  %vm644 = vcmp.le.f32.partialorder %v380, 6.0
  %vm645 = vmand %vm613, %vm629
  %vm646 = vmand %vm614, %vm630
  %vm647 = vmand %vm615, %vm631
  %vm648 = vmand %vm616, %vm632
  %vm649 = vmand %vm617, %vm633
  %vm650 = vmand %vm618, %vm634
  %vm651 = vmand %vm619, %vm635
  %vm652 = vmand %vm620, %vm636
  %vm653 = vmand %vm621, %vm637
  %vm654 = vmand %vm622, %vm638
  %vm655 = vmand %vm623, %vm639
  %vm656 = vmand %vm624, %vm640
  %vm657 = vmand %vm625, %vm641
  %vm658 = vmand %vm626, %vm642
  %vm659 = vmand %vm627, %vm643
  %vm660 = vmand %vm628, %vm644
  %vm661 = vcmp.eq.f32.partialorder %v365, 7.0
  %vm662 = vcmp.eq.f32.partialorder %v366, 7.0
  %vm663 = vcmp.eq.f32.partialorder %v367, 7.0
  %vm664 = vcmp.eq.f32.partialorder %v368, 7.0
  %vm665 = vcmp.eq.f32.partialorder %v369, 7.0
  %vm666 = vcmp.eq.f32.partialorder %v370, 7.0
  %vm667 = vcmp.eq.f32.partialorder %v371, 7.0
  %vm668 = vcmp.eq.f32.partialorder %v372, 7.0
  %vm669 = vcmp.eq.f32.partialorder %v373, 7.0
  %vm670 = vcmp.eq.f32.partialorder %v374, 7.0
  %vm671 = vcmp.eq.f32.partialorder %v375, 7.0
  %vm672 = vcmp.eq.f32.partialorder %v376, 7.0
  %vm673 = vcmp.eq.f32.partialorder %v377, 7.0
  %vm674 = vcmp.eq.f32.partialorder %v378, 7.0
  %vm675 = vcmp.eq.f32.partialorder %v379, 7.0
  %vm676 = vcmp.eq.f32.partialorder %v380, 7.0
  %vm677 = vmand %vm549, %vm661
  %vm678 = vmand %vm550, %vm662
  %vm679 = vmand %vm551, %vm663
  %vm680 = vmand %vm552, %vm664
  %vm681 = vmand %vm553, %vm665
  %vm682 = vmand %vm554, %vm666
  %vm683 = vmand %vm555, %vm667
  %vm684 = vmand %vm556, %vm668
  %vm685 = vmand %vm557, %vm669
  %vm686 = vmand %vm558, %vm670
  %vm687 = vmand %vm559, %vm671
  %vm688 = vmand %vm560, %vm672
  %vm689 = vmand %vm561, %vm673
  %vm690 = vmand %vm562, %vm674
  %vm691 = vmand %vm563, %vm675
  %vm692 = vmand %vm564, %vm676
  %v693 = vsel %vm565, %v234, 0.0
  %v694 = vsel %vm566, %v236, 0.0
  %v695 = vsel %vm567, %v238, 0.0
  %v696 = vsel %vm568, %v240, 0.0
  %v697 = vsel %vm569, %v242, 0.0
  %v698 = vsel %vm570, %v244, 0.0
  %v699 = vsel %vm571, %v246, 0.0
  %v700 = vsel %vm572, %v248, 0.0
  %v701 = vsel %vm573, %v250, 0.0
  %v702 = vsel %vm574, %v252, 0.0
  %v703 = vsel %vm575, %v254, 0.0
  %v704 = vsel %vm576, %v256, 0.0
  %v705 = vsel %vm577, %v258, 0.0
  %v706 = vsel %vm578, %v260, 0.0
  %v707 = vsel %vm579, %v262, 0.0
  %v708 = vsel %vm580, %v264, 0.0
  %v709 = vsel %vm581, %v234, 0.0
  %v710 = vsel %vm582, %v236, 0.0
  %v711 = vsel %vm583, %v238, 0.0
  %v712 = vsel %vm584, %v240, 0.0
  %v713 = vsel %vm585, %v242, 0.0
  %v714 = vsel %vm586, %v244, 0.0
  %v715 = vsel %vm587, %v246, 0.0
  %v716 = vsel %vm588, %v248, 0.0
  %v717 = vsel %vm589, %v250, 0.0
  %v718 = vsel %vm590, %v252, 0.0
  %v719 = vsel %vm591, %v254, 0.0
  %v720 = vsel %vm592, %v256, 0.0
  %v721 = vsel %vm593, %v258, 0.0
  %v722 = vsel %vm594, %v260, 0.0
  %v723 = vsel %vm595, %v262, 0.0
  %v724 = vsel %vm596, %v264, 0.0
  %v725 = vmul.f32 %v709, 0.5
  %v726 = vmul.f32 %v710, 0.5
  %v727 = vmul.f32 %v711, 0.5
  %v728 = vmul.f32 %v712, 0.5
  %v729 = vmul.f32 %v713, 0.5
  %v730 = vmul.f32 %v714, 0.5
  %v731 = vmul.f32 %v715, 0.5
  %v732 = vmul.f32 %v716, 0.5
  %v733 = vmul.f32 %v717, 0.5
  %v734 = vmul.f32 %v718, 0.5
  %v735 = vmul.f32 %v719, 0.5
  %v736 = vmul.f32 %v720, 0.5
  %v737 = vmul.f32 %v721, 0.5
  %v738 = vmul.f32 %v722, 0.5
  %v739 = vmul.f32 %v723, 0.5
  %v740 = vmul.f32 %v724, 0.5
  %v741 = vadd.f32 %v693, %v725
  %v742 = vadd.f32 %v694, %v726
  %v743 = vadd.f32 %v695, %v727
  %v744 = vadd.f32 %v696, %v728
  %v745 = vadd.f32 %v697, %v729
  %v746 = vadd.f32 %v698, %v730
  %v747 = vadd.f32 %v699, %v731
  %v748 = vadd.f32 %v700, %v732
  %v749 = vadd.f32 %v701, %v733
  %v750 = vadd.f32 %v702, %v734
  %v751 = vadd.f32 %v703, %v735
  %v752 = vadd.f32 %v704, %v736
  %v753 = vadd.f32 %v705, %v737
  %v754 = vadd.f32 %v706, %v738
  %v755 = vadd.f32 %v707, %v739
  %v756 = vadd.f32 %v708, %v740
  %v757 = vsel %vm645, %v234, 0.0
  %v758 = vsel %vm646, %v236, 0.0
  %v759 = vsel %vm647, %v238, 0.0
  %v760 = vsel %vm648, %v240, 0.0
  %v761 = vsel %vm649, %v242, 0.0
  %v762 = vsel %vm650, %v244, 0.0
  %v763 = vsel %vm651, %v246, 0.0
  %v764 = vsel %vm652, %v248, 0.0
  %v765 = vsel %vm653, %v250, 0.0
  %v766 = vsel %vm654, %v252, 0.0
  %v767 = vsel %vm655, %v254, 0.0
  %v768 = vsel %vm656, %v256, 0.0
  %v769 = vsel %vm657, %v258, 0.0
  %v770 = vsel %vm658, %v260, 0.0
  %v771 = vsel %vm659, %v262, 0.0
  %v772 = vsel %vm660, %v264, 0.0
  %v773 = vadd.f32 %v725, %v757
  %v774 = vadd.f32 %v726, %v758
  %v775 = vadd.f32 %v727, %v759
  %v776 = vadd.f32 %v728, %v760
  %v777 = vadd.f32 %v729, %v761
  %v778 = vadd.f32 %v730, %v762
  %v779 = vadd.f32 %v731, %v763
  %v780 = vadd.f32 %v732, %v764
  %v781 = vadd.f32 %v733, %v765
  %v782 = vadd.f32 %v734, %v766
  %v783 = vadd.f32 %v735, %v767
  %v784 = vadd.f32 %v736, %v768
  %v785 = vadd.f32 %v737, %v769
  %v786 = vadd.f32 %v738, %v770
  %v787 = vadd.f32 %v739, %v771
  %v788 = vadd.f32 %v740, %v772
  %v789 = vsel %vm677, %v234, 0.0
  %v790 = vsel %vm678, %v236, 0.0
  %v791 = vsel %vm679, %v238, 0.0
  %v792 = vsel %vm680, %v240, 0.0
  %v793 = vsel %vm681, %v242, 0.0
  %v794 = vsel %vm682, %v244, 0.0
  %v795 = vsel %vm683, %v246, 0.0
  %v796 = vsel %vm684, %v248, 0.0
  %v797 = vsel %vm685, %v250, 0.0
  %v798 = vsel %vm686, %v252, 0.0
  %v799 = vsel %vm687, %v254, 0.0
  %v800 = vsel %vm688, %v256, 0.0
  %v801 = vsel %vm689, %v258, 0.0
  %v802 = vsel %vm690, %v260, 0.0
  %v803 = vsel %vm691, %v262, 0.0
  %v804 = vsel %vm692, %v264, 0.0
  %v805 = vadd.f32 %v773, %v789
  %v806 = vadd.f32 %v774, %v790
  %v807 = vadd.f32 %v775, %v791
  %v808 = vadd.f32 %v776, %v792
  %v809 = vadd.f32 %v777, %v793
  %v810 = vadd.f32 %v778, %v794
  %v811 = vadd.f32 %v779, %v795
  %v812 = vadd.f32 %v780, %v796
  %v813 = vadd.f32 %v781, %v797
  %v814 = vadd.f32 %v782, %v798
  %v815 = vadd.f32 %v783, %v799
  %v816 = vadd.f32 %v784, %v800
  %v817 = vadd.f32 %v785, %v801
  %v818 = vadd.f32 %v786, %v802
  %v819 = vadd.f32 %v787, %v803
  %v820 = vadd.f32 %v788, %v804
  %v821 = vld [vmem:[%s4] sm:$0xff]
  %v822 = vld [vmem:[%s4 + $0x8] sm:$0xff]
  %v823 = vld [vmem:[%s4 + $0x10] sm:$0xff]
  %v824 = vld [vmem:[%s4 + $0x18] sm:$0xff]
  %v825 = vld [vmem:[%s4 + $0x20] sm:$0xff]
  %v826 = vld [vmem:[%s4 + $0x28] sm:$0xff]
  %v827 = vld [vmem:[%s4 + $0x30] sm:$0xff]
  %v828 = vld [vmem:[%s4 + $0x38] sm:$0xff]
  %v829 = vld [vmem:[%s4 + $0x40] sm:$0xff]
  %v830 = vld [vmem:[%s4 + $0x48] sm:$0xff]
  %v831 = vld [vmem:[%s4 + $0x50] sm:$0xff]
  %v832 = vld [vmem:[%s4 + $0x58] sm:$0xff]
  %v833 = vld [vmem:[%s4 + $0x60] sm:$0xff]
  %v834 = vld [vmem:[%s4 + $0x68] sm:$0xff]
  %v835 = vld [vmem:[%s4 + $0x70] sm:$0xff]
  %v836 = vld [vmem:[%s4 + $0x78] sm:$0xff]
  %837 = vadd.xlane.f32.xlu0 %v741
  %v838 = vpop.xlane.xlu0 %837
  %839 = vadd.xlane.f32.xlu0 %v742
  %v840 = vpop.xlane.xlu0 %839
  %841 = vadd.xlane.f32.xlu0 %v743
  %v842 = vpop.xlane.xlu0 %841
  %843 = vadd.xlane.f32.xlu0 %v744
  %v844 = vpop.xlane.xlu0 %843
  %845 = vadd.xlane.f32.xlu0 %v745
  %v846 = vpop.xlane.xlu0 %845
  %847 = vadd.xlane.f32.xlu0 %v746
  %v848 = vpop.xlane.xlu0 %847
  %849 = vadd.xlane.f32.xlu0 %v747
  %v850 = vpop.xlane.xlu0 %849
  %851 = vadd.xlane.f32.xlu0 %v748
  %v852 = vpop.xlane.xlu0 %851
  %853 = vadd.xlane.f32.xlu0 %v749
  %v854 = vpop.xlane.xlu0 %853
  %855 = vadd.xlane.f32.xlu0 %v750
  %v856 = vpop.xlane.xlu0 %855
  %857 = vadd.xlane.f32.xlu0 %v751
  %v858 = vpop.xlane.xlu0 %857
  %859 = vadd.xlane.f32.xlu0 %v752
  %v860 = vpop.xlane.xlu0 %859
  %861 = vadd.xlane.f32.xlu0 %v753
  %v862 = vpop.xlane.xlu0 %861
  %863 = vadd.xlane.f32.xlu0 %v754
  %v864 = vpop.xlane.xlu0 %863
  %865 = vadd.xlane.f32.xlu0 %v755
  %v866 = vpop.xlane.xlu0 %865
  %867 = vadd.xlane.f32.xlu0 %v756
  %v868 = vpop.xlane.xlu0 %867
  %v869 = vadd.f32 %v821, %v838
  %v870 = vadd.f32 %v822, %v840
  %v871 = vadd.f32 %v823, %v842
  %v872 = vadd.f32 %v824, %v844
  %v873 = vadd.f32 %v825, %v846
  %v874 = vadd.f32 %v826, %v848
  %v875 = vadd.f32 %v827, %v850
  %v876 = vadd.f32 %v828, %v852
  %v877 = vadd.f32 %v829, %v854
  %v878 = vadd.f32 %v830, %v856
  %v879 = vadd.f32 %v831, %v858
  %v880 = vadd.f32 %v832, %v860
  %v881 = vadd.f32 %v833, %v862
  %v882 = vadd.f32 %v834, %v864
  %v883 = vadd.f32 %v835, %v866
  %v884 = vadd.f32 %v836, %v868
  %vm885 = vcmask 7168
  %886 = vst.msk [vmem:[%s4] sm:$0xff] %vm885, %v869
  %887 = vst.msk [vmem:[%s4 + $0x8] sm:$0xff] %vm885, %v870
  %888 = vst.msk [vmem:[%s4 + $0x10] sm:$0xff] %vm885, %v871
  %889 = vst.msk [vmem:[%s4 + $0x18] sm:$0xff] %vm885, %v872
  %890 = vst.msk [vmem:[%s4 + $0x20] sm:$0xff] %vm885, %v873
  %891 = vst.msk [vmem:[%s4 + $0x28] sm:$0xff] %vm885, %v874
  %892 = vst.msk [vmem:[%s4 + $0x30] sm:$0xff] %vm885, %v875
  %893 = vst.msk [vmem:[%s4 + $0x38] sm:$0xff] %vm885, %v876
  %894 = vst.msk [vmem:[%s4 + $0x40] sm:$0xff] %vm885, %v877
  %895 = vst.msk [vmem:[%s4 + $0x48] sm:$0xff] %vm885, %v878
  %896 = vst.msk [vmem:[%s4 + $0x50] sm:$0xff] %vm885, %v879
  %897 = vst.msk [vmem:[%s4 + $0x58] sm:$0xff] %vm885, %v880
  %898 = vst.msk [vmem:[%s4 + $0x60] sm:$0xff] %vm885, %v881
  %899 = vst.msk [vmem:[%s4 + $0x68] sm:$0xff] %vm885, %v882
  %900 = vst.msk [vmem:[%s4 + $0x70] sm:$0xff] %vm885, %v883
  %901 = vst.msk [vmem:[%s4 + $0x78] sm:$0xff] %vm885, %v884
  %v902 = vld [vmem:[%s5] sm:$0xff]
  %v903 = vld [vmem:[%s5 + $0x8] sm:$0xff]
  %v904 = vld [vmem:[%s5 + $0x10] sm:$0xff]
  %v905 = vld [vmem:[%s5 + $0x18] sm:$0xff]
  %v906 = vld [vmem:[%s5 + $0x20] sm:$0xff]
  %v907 = vld [vmem:[%s5 + $0x28] sm:$0xff]
  %v908 = vld [vmem:[%s5 + $0x30] sm:$0xff]
  %v909 = vld [vmem:[%s5 + $0x38] sm:$0xff]
  %v910 = vld [vmem:[%s5 + $0x40] sm:$0xff]
  %v911 = vld [vmem:[%s5 + $0x48] sm:$0xff]
  %v912 = vld [vmem:[%s5 + $0x50] sm:$0xff]
  %v913 = vld [vmem:[%s5 + $0x58] sm:$0xff]
  %v914 = vld [vmem:[%s5 + $0x60] sm:$0xff]
  %v915 = vld [vmem:[%s5 + $0x68] sm:$0xff]
  %v916 = vld [vmem:[%s5 + $0x70] sm:$0xff]
  %v917 = vld [vmem:[%s5 + $0x78] sm:$0xff]
  %918 = vadd.xlane.f32.xlu0 %v805
  %v919 = vpop.xlane.xlu0 %918
  %920 = vadd.xlane.f32.xlu0 %v806
  %v921 = vpop.xlane.xlu0 %920
  %922 = vadd.xlane.f32.xlu0 %v807
  %v923 = vpop.xlane.xlu0 %922
  %924 = vadd.xlane.f32.xlu0 %v808
  %v925 = vpop.xlane.xlu0 %924
  %926 = vadd.xlane.f32.xlu0 %v809
  %v927 = vpop.xlane.xlu0 %926
  %928 = vadd.xlane.f32.xlu0 %v810
  %v929 = vpop.xlane.xlu0 %928
  %930 = vadd.xlane.f32.xlu0 %v811
  %v931 = vpop.xlane.xlu0 %930
  %932 = vadd.xlane.f32.xlu0 %v812
  %v933 = vpop.xlane.xlu0 %932
  %934 = vadd.xlane.f32.xlu0 %v813
  %v935 = vpop.xlane.xlu0 %934
  %936 = vadd.xlane.f32.xlu0 %v814
  %v937 = vpop.xlane.xlu0 %936
  %938 = vadd.xlane.f32.xlu0 %v815
  %v939 = vpop.xlane.xlu0 %938
  %940 = vadd.xlane.f32.xlu0 %v816
  %v941 = vpop.xlane.xlu0 %940
  %942 = vadd.xlane.f32.xlu0 %v817
  %v943 = vpop.xlane.xlu0 %942
  %944 = vadd.xlane.f32.xlu0 %v818
  %v945 = vpop.xlane.xlu0 %944
  %946 = vadd.xlane.f32.xlu0 %v819
  %v947 = vpop.xlane.xlu0 %946
  %948 = vadd.xlane.f32.xlu0 %v820
  %v949 = vpop.xlane.xlu0 %948
  %v950 = vadd.f32 %v902, %v919
  %v951 = vadd.f32 %v903, %v921
  %v952 = vadd.f32 %v904, %v923
  %v953 = vadd.f32 %v905, %v925
  %v954 = vadd.f32 %v906, %v927
  %v955 = vadd.f32 %v907, %v929
  %v956 = vadd.f32 %v908, %v931
  %v957 = vadd.f32 %v909, %v933
  %v958 = vadd.f32 %v910, %v935
  %v959 = vadd.f32 %v911, %v937
  %v960 = vadd.f32 %v912, %v939
  %v961 = vadd.f32 %v913, %v941
  %v962 = vadd.f32 %v914, %v943
  %v963 = vadd.f32 %v915, %v945
  %v964 = vadd.f32 %v916, %v947
  %v965 = vadd.f32 %v917, %v949
  %966 = vst.msk [vmem:[%s5] sm:$0xff] %vm885, %v950
  %967 = vst.msk [vmem:[%s5 + $0x8] sm:$0xff] %vm885, %v951
  %968 = vst.msk [vmem:[%s5 + $0x10] sm:$0xff] %vm885, %v952
  %969 = vst.msk [vmem:[%s5 + $0x18] sm:$0xff] %vm885, %v953
  %970 = vst.msk [vmem:[%s5 + $0x20] sm:$0xff] %vm885, %v954
  %971 = vst.msk [vmem:[%s5 + $0x28] sm:$0xff] %vm885, %v955
  %972 = vst.msk [vmem:[%s5 + $0x30] sm:$0xff] %vm885, %v956
  %973 = vst.msk [vmem:[%s5 + $0x38] sm:$0xff] %vm885, %v957
  %974 = vst.msk [vmem:[%s5 + $0x40] sm:$0xff] %vm885, %v958
  %975 = vst.msk [vmem:[%s5 + $0x48] sm:$0xff] %vm885, %v959
  %976 = vst.msk [vmem:[%s5 + $0x50] sm:$0xff] %vm885, %v960
  %977 = vst.msk [vmem:[%s5 + $0x58] sm:$0xff] %vm885, %v961
  %978 = vst.msk [vmem:[%s5 + $0x60] sm:$0xff] %vm885, %v962
  %979 = vst.msk [vmem:[%s5 + $0x68] sm:$0xff] %vm885, %v963
  %980 = vst.msk [vmem:[%s5 + $0x70] sm:$0xff] %vm885, %v964
  %981 = vst.msk [vmem:[%s5 + $0x78] sm:$0xff] %vm885, %v965
  // Predicated region
  $region22: #{tpu_custom_call.1} parent=0 // pred_check
    _
  $region23: #{tpu_custom_call.1} parent=0 // pred_check_branch
    %983 = sbr.rel (0) target = $region25
  $region24: #{tpu_custom_call.1} parent=0 // pred_region
    _
  $region25: #{tpu_custom_call.1} parent=0 // pred_fallthru
    _
  // Predicated region
  $region26: #{tpu_custom_call.1} parent=0 // pred_check
    _
  $region27: #{tpu_custom_call.1} parent=0 // pred_check_branch
    %985 = sbr.rel (0) target = $region29
  $region28: #{tpu_custom_call.1} parent=0 // pred_region
    _
  $region29: #{tpu_custom_call.1} parent=0 // pred_fallthru
    _
  // Predicated region
  $region30: #{tpu_custom_call.1} parent=0 // pred_check
    _
  $region31: #{tpu_custom_call.1} parent=0 // pred_check_branch
    %987 = sbr.rel (0) target = $region33
  $region32: #{tpu_custom_call.1} parent=0 // pred_region
    _
  $region33: #{tpu_custom_call.1} parent=0 // pred_fallthru
    _
  // Predicated region
  $region34: #{tpu_custom_call.1} parent=0 // pred_check
    _
  $region35: #{tpu_custom_call.1} parent=0 // pred_check_branch
    %989 = sbr.rel (0) target = $region37
  $region36: #{tpu_custom_call.1} parent=0 // pred_region
    _
  $region37: #{tpu_custom_call.1} parent=0 // pred_fallthru
    _

</llo_original>
